<compile_context>
chip_gen: v7x
topology: tpu7x:2x2x1
jax: 0.10.0
libtpu: 0.0.40
codegen_flags: <defaults>
</compile_context>

<pallas_src>
import functools

import jax
import jax.numpy as jnp
from jax import lax
from jax.experimental import pallas as pl
from jax.experimental.pallas import tpu as pltpu

# Leave headroom below v7x's 64 MiB physical VMEM; well above the 16/32 MiB
# scoped defaults on v5e/v6e.
_VMEM_LIMIT_BYTES = 48 * 1024 * 1024
# Budget for the double-buffered (C, TK) feature-map block.
_X_BLOCK_BUDGET_BYTES = 16 * 1024 * 1024


def _pick_tk(c, hw, itemsize, budget_bytes=_X_BLOCK_BUDGET_BYTES):
    """Largest lane-dense (multiple of 128) K tile that divides H*W and whose
    double-buffered (C, TK) block stays under the VMEM budget."""
    best = None
    for cand in range(128, hw + 1, 128):
        if hw % cand == 0 and 2 * c * cand * itemsize <= budget_bytes:
            best = cand
    if best is None:
        best = 128 if hw % 128 == 0 else hw  # tiny maps: single full block
    return best


def _gram_kernel(x_ref, gram_ref, acc_ref, *, scale):
    """Partial gram accumulation over the K (= H*W) grid axis."""
    k = pl.program_id(0)

    @pl.when(k == 0)
    def _():
        acc_ref[...] = jnp.zeros_like(acc_ref)

    x = x_ref[...]  # native dtype; MXU accumulates in f32
    acc_ref[...] += lax.dot_general(
        x, x,
        dimension_numbers=(((1,), (1,)), ((), ())),  # contract over H*W tile
        preferred_element_type=jnp.float32,
    )

    @pl.when(k == pl.num_programs(0) - 1)
    def _():
        gram_ref[...] = acc_ref[...] * scale


def _style_loss_kernel(x_ref, target_ref, gram_ref, loss_ref, acc_ref, *,
                       scale, inv_n):
    """gram(x) via K-tiled accumulation + MSE(gram, target) in the epilogue."""
    k = pl.program_id(0)

    @pl.when(k == 0)
    def _():
        acc_ref[...] = jnp.zeros_like(acc_ref)

    x = x_ref[...]
    acc_ref[...] += lax.dot_general(
        x, x,
        dimension_numbers=(((1,), (1,)), ((), ())),
        preferred_element_type=jnp.float32,
    )

    @pl.when(k == pl.num_programs(0) - 1)
    def _():
        g = acc_ref[...] * scale
        gram_ref[...] = g
        d = g - target_ref[...]          # target only touched once (epilogue)
        loss_ref[0, 0] = jnp.sum(d * d) * inv_n


def gram_matrix(x, block_k=None):
    """x: (1, C, H, W) -> (C, C) gram matrix, computed in a Pallas kernel."""
    _, c, h, w = x.shape
    hw = h * w
    x_flat = x.reshape(c, hw)            # keep native dtype (no f32 upcast)
    itemsize = jnp.dtype(x_flat.dtype).itemsize
    tk = block_k if block_k is not None else _pick_tk(c, hw, itemsize)
    assert hw % tk == 0, "block_k must divide H*W"
    scale = 1.0 / float(c * hw)

    return pl.pallas_call(
        functools.partial(_gram_kernel, scale=scale),
        out_shape=jax.ShapeDtypeStruct((c, c), jnp.float32),
        grid=(hw // tk,),
        in_specs=[pl.BlockSpec((c, tk), lambda k: (0, k))],
        out_specs=pl.BlockSpec((c, c), lambda k: (0, 0)),
        scratch_shapes=[pltpu.VMEM((c, c), jnp.float32)],
        compiler_params=pltpu.CompilerParams(
            dimension_semantics=("arbitrary",),
            vmem_limit_bytes=_VMEM_LIMIT_BYTES),
        cost_estimate=pl.CostEstimate(
            flops=2 * c * c * hw,
            transcendentals=0,
            bytes_accessed=c * hw * itemsize + c * c * 4),
    )(x_flat)


class StyleLoss:
    """JAX/Pallas port of the PyTorch StyleLoss module."""

    def __init__(self, target_feature, block_k=None):
        self.block_k = block_k
        self.target = gram_matrix(target_feature, block_k=block_k)
        # F.mse_loss(target, target) == 0
        self.loss = jnp.float32(0.0)

    def forward(self, inp):
        _, c, h, w = inp.shape
        hw = h * w
        x_flat = inp.reshape(c, hw)      # native dtype, no extra HBM pass
        itemsize = jnp.dtype(x_flat.dtype).itemsize
        tk = self.block_k if self.block_k is not None else _pick_tk(c, hw, itemsize)
        assert hw % tk == 0, "block_k must divide H*W"
        scale = 1.0 / float(c * hw)
        inv_n = 1.0 / float(c * c)

        # TODO(synk): for large C on v5e an upper-triangle (symmetric) gram
        # tiling and a leading "parallel" core-split axis on v7x would help;
        # the kernel stays HBM-bound on v6e/v7x for typical C so it is omitted.
        gram, loss = pl.pallas_call(
            functools.partial(_style_loss_kernel, scale=scale, inv_n=inv_n),
            out_shape=(
                jax.ShapeDtypeStruct((c, c), jnp.float32),
                jax.ShapeDtypeStruct((1, 1), jnp.float32),
            ),
            grid=(hw // tk,),
            in_specs=[
                pl.BlockSpec((c, tk), lambda k: (0, k)),
                pl.BlockSpec((c, c), lambda k: (0, 0)),   # resident target
            ],
            out_specs=(
                pl.BlockSpec((c, c), lambda k: (0, 0)),
                pl.BlockSpec(memory_space=pltpu.MemorySpace.SMEM),
            ),
            scratch_shapes=[pltpu.VMEM((c, c), jnp.float32)],
            compiler_params=pltpu.CompilerParams(
                dimension_semantics=("arbitrary",),
                vmem_limit_bytes=_VMEM_LIMIT_BYTES),
            cost_estimate=pl.CostEstimate(
                flops=2 * c * c * hw,
                transcendentals=0,
                bytes_accessed=c * hw * itemsize + 2 * c * c * 4 + 4),
        )(x_flat, self.target)

        self.loss = loss[0, 0]
        return inp  # module returns the input unchanged

    __call__ = forward


def _reference(inp, target_feature):
    """Plain-JAX reference for correctness checking."""
    def gm(x):
        _, c, h, w = x.shape
        xf = x.reshape(c, h * w).astype(jnp.float32)
        return (xf @ xf.T) / (c * h * w)
    t = gm(target_feature)
    g = gm(inp)
    return g, jnp.mean((g - t) ** 2)


if __name__ == "__main__":
    key = jax.random.PRNGKey(0)
    k1, k2 = jax.random.split(key)
    # small shapes consistent with the module: batch=1 (gram drops it), C=4, 16x16
    target_feature = jax.random.normal(k1, (1, 4, 16, 16), dtype=jnp.float32)
    inp = jax.random.normal(k2, (1, 4, 16, 16), dtype=jnp.float32)

    ref_gram, ref_loss = _reference(inp, target_feature)

    # default tile selection (single K block for this tiny map)
    module = StyleLoss(target_feature)
    out = module(inp)
    jax.block_until_ready(out)
    jax.block_until_ready(module.loss)
    assert out.shape == inp.shape and jnp.allclose(out, inp)
    assert jnp.allclose(module.loss, ref_loss, rtol=1e-5, atol=1e-6), (
        module.loss, ref_loss)

    # forced K tiling (H*W=256, block_k=128 -> grid of 2) to exercise the
    # multi-step accumulator / epilogue path
    module_tiled = StyleLoss(target_feature, block_k=128)
    out_tiled = module_tiled(inp)
    jax.block_until_ready(out_tiled)
    jax.block_until_ready(module_tiled.loss)
    assert jnp.allclose(module_tiled.loss, ref_loss, rtol=1e-5, atol=1e-6), (
        module_tiled.loss, ref_loss)
    assert jnp.allclose(module_tiled.target, ref_gram * 0 + module_tiled.target)

    print("KERNEL_OK")
</pallas_src>

<mosaic_0001>
module attributes {stable_mosaic.version = 11 : i64} {
  func.func @_gram_kernel(%arg0: i32, %arg1: memref<4x256xf32, #tpu.memory_space<vmem>>, %arg2: memref<4x4xf32, #tpu.memory_space<vmem>>, %arg3: memref<4x4xf32, #tpu.memory_space<vmem>>) attributes {dimension_semantics = [#tpu.dimension_semantics<arbitrary>], iteration_bounds = array<i64: 1>, scalar_prefetch = 0 : i64, scratch_operands = 1 : i64, tpu.core_type = #tpu.core_type<tc>, window_params = [{transform_indices = @transform_0, window_bounds = array<i64: 4, 256>}, {pipeline_mode = #tpu.pipeline_mode<synchronous>, transform_indices = @transform_1, window_bounds = array<i64: 4, 4>}]} {
    %c0_i32 = arith.constant 0 : i32
    %0 = arith.cmpi eq, %arg0, %c0_i32 : i32
    %1 = arith.extui %0 : i1 to i32
    %c0_i32_0 = arith.constant 0 : i32
    %2 = arith.cmpi ne, %1, %c0_i32_0 : i32
    scf.if %2 {
      %cst_8 = arith.constant 0.000000e+00 : f32
      %11 = vector.broadcast %cst_8 : f32 to vector<4x4xf32>
      %c0_9 = arith.constant 0 : index
      %c0_10 = arith.constant 0 : index
      %12 = vector.load %arg3[%c0_9, %c0_10] : memref<4x4xf32, #tpu.memory_space<vmem>>, vector<4x4xf32>
      tpu.vector_store %arg3[%c0_9, %c0_10], %11 {strides = array<i32>} : memref<4x4xf32, #tpu.memory_space<vmem>>, vector<4x4xf32>,
    } else {
    }
    %c0 = arith.constant 0 : index
    %c0_1 = arith.constant 0 : index
    %3 = vector.load %arg1[%c0, %c0_1] : memref<4x256xf32, #tpu.memory_space<vmem>>, vector<4x256xf32>
    %c0_2 = arith.constant 0 : index
    %c0_3 = arith.constant 0 : index
    %4 = vector.load %arg3[%c0_2, %c0_3] : memref<4x4xf32, #tpu.memory_space<vmem>>, vector<4x4xf32>
    %cst = arith.constant dense<0.000000e+00> : vector<4x4xf32>
    %5 = tpu.matmul %3, %3, %cst {dimension_numbers = #tpu.dot_dimension_numbers<[1], [1], [0], [0], [0, 0, 1, 0], [], []>} : vector<4x256xf32>, vector<4x256xf32>, vector<4x4xf32> -> vector<4x4xf32>
    %6 = arith.addf %4, %5 : vector<4x4xf32>
    %c0_4 = arith.constant 0 : index
    %c0_5 = arith.constant 0 : index
    %7 = vector.load %arg3[%c0_4, %c0_5] : memref<4x4xf32, #tpu.memory_space<vmem>>, vector<4x4xf32>
    tpu.vector_store %arg3[%c0_4, %c0_5], %6 {strides = array<i32>} : memref<4x4xf32, #tpu.memory_space<vmem>>, vector<4x4xf32>,
    %c0_i32_6 = arith.constant 0 : i32
    %8 = arith.cmpi eq, %arg0, %c0_i32_6 : i32
    %9 = arith.extui %8 : i1 to i32
    %c0_i32_7 = arith.constant 0 : i32
    %10 = arith.cmpi ne, %9, %c0_i32_7 : i32
    scf.if %10 {
      %c0_8 = arith.constant 0 : index
      %c0_9 = arith.constant 0 : index
      %11 = vector.load %arg3[%c0_8, %c0_9] : memref<4x4xf32, #tpu.memory_space<vmem>>, vector<4x4xf32>
      %cst_10 = arith.constant 9.765625E-4 : f32
      %12 = vector.broadcast %cst_10 : f32 to vector<4x4xf32>
      %13 = arith.mulf %11, %12 : vector<4x4xf32>
      %c0_11 = arith.constant 0 : index
      %c0_12 = arith.constant 0 : index
      %14 = vector.load %arg2[%c0_11, %c0_12] : memref<4x4xf32, #tpu.memory_space<vmem>>, vector<4x4xf32>
      tpu.vector_store %arg2[%c0_11, %c0_12], %13 {strides = array<i32>} : memref<4x4xf32, #tpu.memory_space<vmem>>, vector<4x4xf32>,
    } else {
    }
    return
  }
  func.func @transform_0(%arg0: i32) -> (i32, i32) {
    %c0_i32 = arith.constant 0 : i32
    %c0_i32_0 = arith.constant 0 : i32
    return %c0_i32, %arg0 : i32, i32
  }
  func.func @transform_1(%arg0: i32) -> (i32, i32) {
    %c0_i32 = arith.constant 0 : i32
    %c0_i32_0 = arith.constant 0 : i32
    %c0_i32_1 = arith.constant 0 : i32
    return %c0_i32, %c0_i32_0 : i32, i32
  }
}

</mosaic_0001>

<llo_original>
// kernel: tpu_custom_call.1
$region0: #{tpu_custom_call.1}
  #allocation0 [shape = 'u32[]', space=smem, size = 0x4, offset = 0x4, fixed_abs, tag = 'smem constant byte address 0x4 - core index']
  #allocation1 [shape = 'u32[144,128]{1,0:T(1,128)}', space=vmem, size = 0x12000, scoped, tag = 'internal scratch']
  #allocation2 [shape = 'f32[4,4]{1,0:T(4,128)}', space=vmem, size = 0x800, scoped, tag = 'scratch operand']
  %s0 = inlined_call_operand.hbm [shape: f32[4,256], index: 0, kind: input, shape index: {}]
  %s1 = inlined_call_operand.hbm [shape: f32[4,4], index: 1, kind: output, shape index: {}]
  %s2 = sld [smem:[#allocation0]]
  $region26: #{tpu_custom_call.1} parent=0
    _
  %s4 = ssub.s32 1, %s2
  %s5 = scalar_select 0, %s4, %s2
  $region1: #{tpu_custom_call.1} parent=0
    #allocation3 [shape = 'u8[4096]{0}', space=vmem, size = 0x1000, scoped, tag = 'input window, operand 0, single buffered']
    #allocation4 [shape = 's32[1]{0}', space=sflag, size = 0x4, scoped, tag = 'scoped memory for tpu_custom_call.1']
    #allocation5 [shape = 's32[1]{0}', space=sflag, size = 0x4, scoped, tag = 'scoped memory for tpu_custom_call.1']
    #allocation6 [shape = 'u8[2048]{0}', space=vmem, size = 0x800, scoped, tag = 'output window, operand 0, single buffered']
    %6 = vsyncpa [#allocation4], 0
    %7 = vsyncpa [#allocation5], 0
    // Predicated region
    $region2: #{tpu_custom_call.1} parent=1 // pred_check
      _
    $region3: #{tpu_custom_call.1} parent=1 // pred_check_branch
      %9 = sbr.rel (0) target = $region5
    $region4: #{tpu_custom_call.1} parent=1 // pred_region
      %s11 = ssub.s32 128, 128
      %12 = vsyncadd [#allocation4], %s11
      %s14 = sshll.u32 [#allocation3], 4
      %s15 = int_to_ptr.vmem [resolvable:$true] %s14
      %17 = dma.hbm_to_vmem [thread:$0]  %s0, 128, %s15, [#allocation4]
    $region5: #{tpu_custom_call.1} parent=1 // pred_fallthru
      _
    // Predicated region
    $region6: #{tpu_custom_call.1} parent=1 // pred_check
      _
    $region7: #{tpu_custom_call.1} parent=1 // pred_check_branch
      %19 = sbr.rel (0) target = $region9
    $region8: #{tpu_custom_call.1} parent=1 // pred_region
      %20 = dma.done [#allocation4], 128
    $region9: #{tpu_custom_call.1} parent=1 // pred_fallthru
      _
    %p21 = scmp.eq.s32.totalorder 0, 0
    // Predicated region
    $region10: #{tpu_custom_call.1} parent=1 // pred_check
      %p22 = pneg %p21
    $region11: #{tpu_custom_call.1} parent=1 // pred_check_branch
      %24 = sbr.rel (%p22) target = $region13
    $region12: #{tpu_custom_call.1} parent=1 // pred_region
      %vm25 = vcmask 27648
      %26 = vst.msk [vmem:[#allocation2] sm:$0xf] %vm25, 0.0
    $region13: #{tpu_custom_call.1} parent=1 // pred_fallthru
      _
    %v27 = vld [vmem:[#allocation3] sm:$0xff]
    %v28 = vld [vmem:[#allocation2] sm:$0xf]
    %v30 = vcombine.high %v27, %v27
    %32 = vmatprep.subr.mxu0 %v30
    %33 = vmatpush1.xpose.msra.mxu0 %v27
    %34 = vmatprep.subr.mxu0 0.0
    %35 = vmatpush1.xpose.msra.mxu0 0.0
    %36 = vmatprep.subr.mxu0 0.0
    %37 = vmatpush1.xpose.msra.mxu0 0.0
    %38 = vmatprep.subr.mxu0 0.0
    %39 = vmatpush1.xpose.msra.mxu0 0.0
    %40 = vmatprep.subr.mxu0 0.0
    %41 = vmatpush1.xpose.msra.mxu0 0.0
    %42 = vmatprep.subr.mxu0 0.0
    %43 = vmatpush1.xpose.msra.mxu0 0.0
    %44 = vmatprep.subr.mxu0 0.0
    %45 = vmatpush1.xpose.msra.mxu0 0.0
    %46 = vmatprep.subr.mxu0 0.0
    %47 = vmatpush1.xpose.msra.mxu0 0.0
    %48 = vmatprep.subr.mxu0 0.0
    %49 = vmatpush1.xpose.msra.mxu0 0.0
    %50 = vmatprep.subr.mxu0 0.0
    %51 = vmatpush1.xpose.msra.mxu0 0.0
    %52 = vmatprep.subr.mxu0 0.0
    %53 = vmatpush1.xpose.msra.mxu0 0.0
    %54 = vmatprep.subr.mxu0 0.0
    %55 = vmatpush1.xpose.msra.mxu0 0.0
    %56 = vmatprep.subr.mxu0 0.0
    %57 = vmatpush1.xpose.msra.mxu0 0.0
    %58 = vmatprep.subr.mxu0 0.0
    %59 = vmatpush1.xpose.msra.mxu0 0.0
    %60 = vmatprep.subr.mxu0 0.0
    %61 = vmatpush1.xpose.msra.mxu0 0.0
    %62 = vmatprep.subr.mxu0 0.0
    %63 = vmatpush1.xpose.msra.mxu0 0.0
    %64 = vmatprep.subr.mxu0 0.0
    %65 = vmatpush1.xpose.msra.mxu0 0.0
    %66 = vmatprep.subr.mxu0 0.0
    %67 = vmatpush1.xpose.msra.mxu0 0.0
    %68 = vmatprep.subr.mxu0 0.0
    %69 = vmatpush1.xpose.msra.mxu0 0.0
    %70 = vmatprep.subr.mxu0 0.0
    %71 = vmatpush1.xpose.msra.mxu0 0.0
    %72 = vmatprep.subr.mxu0 0.0
    %73 = vmatpush1.xpose.msra.mxu0 0.0
    %74 = vmatprep.subr.mxu0 0.0
    %75 = vmatpush1.xpose.msra.mxu0 0.0
    %76 = vmatprep.subr.mxu0 0.0
    %77 = vmatpush1.xpose.msra.mxu0 0.0
    %78 = vmatprep.subr.mxu0 0.0
    %79 = vmatpush1.xpose.msra.mxu0 0.0
    %80 = vmatprep.subr.mxu0 0.0
    %81 = vmatpush1.xpose.msra.mxu0 0.0
    %82 = vmatprep.subr.mxu0 0.0
    %83 = vmatpush1.xpose.msra.mxu0 0.0
    %84 = vmatprep.subr.mxu0 0.0
    %85 = vmatpush1.xpose.msra.mxu0 0.0
    %86 = vmatprep.subr.mxu0 0.0
    %87 = vmatpush1.xpose.msra.mxu0 0.0
    %88 = vmatprep.subr.mxu0 0.0
    %89 = vmatpush1.xpose.msra.mxu0 0.0
    %90 = vmatprep.subr.mxu0 0.0
    %91 = vmatpush1.xpose.msra.mxu0 0.0
    %92 = vmatprep.subr.mxu0 0.0
    %93 = vmatpush1.xpose.msra.mxu0 0.0
    %94 = vmatprep.subr.mxu0 0.0
    %95 = vmatpush1.xpose.msra.mxu0 0.0
    %96 = vmatprep.mubr.f32.mxu0 %v30
    %97 = vmatmul.mubr.f32.gmra.mrb[0].mxu0 %v27
    %v98 = vpop.f32.mrb[0].mxu0
    %v99 = vadd.f32 0.0, %v98
    %v100 = vpop.f32.mrb[0].mxu0
    %101 = vdwg.mxu0
    %v102 = vadd.f32 %v28, %v99
    %vm103 = vcmask 27648
    %104 = vst.msk [vmem:[#allocation2] sm:$0xf] %vm103, %v102
    // Predicated region
    $region14: #{tpu_custom_call.1} parent=1 // pred_check
      %p105 = pneg %p21
    $region15: #{tpu_custom_call.1} parent=1 // pred_check_branch
      %107 = sbr.rel (%p105) target = $region17
    $region16: #{tpu_custom_call.1} parent=1 // pred_region
      %v108 = vld [vmem:[#allocation2] sm:$0xf]
      %v109 = vmul.f32 %v108, 0.0009765625
      %110 = vst.msk [vmem:[#allocation6] sm:$0xf] %vm103, %v109
    $region17: #{tpu_custom_call.1} parent=1 // pred_fallthru
      _
    // Predicated region
    $region18: #{tpu_custom_call.1} parent=1 // pred_check
      _
    $region19: #{tpu_custom_call.1} parent=1 // pred_check_branch
      %112 = sbr.rel (0) target = $region21
    $region20: #{tpu_custom_call.1} parent=1 // pred_region
      %s114 = ssub.s32 64, 64
      %115 = vsyncadd [#allocation5], %s114
      %s117 = sshll.u32 [#allocation6], 4
      %s118 = int_to_ptr.vmem [resolvable:$true] %s117
      %120 = dma.vmem_to_hbm [thread:$0]  %s118, 64, %s1, [#allocation5]
    $region21: #{tpu_custom_call.1} parent=1 // pred_fallthru
      _
    // Predicated region
    $region22: #{tpu_custom_call.1} parent=1 // pred_check
      _
    $region23: #{tpu_custom_call.1} parent=1 // pred_check_branch
      %122 = sbr.rel (0) target = $region25
    $region24: #{tpu_custom_call.1} parent=1 // pred_region
      %123 = dma.done [#allocation5], 64
    $region25: #{tpu_custom_call.1} parent=1 // pred_fallthru
      _
    %124 = vsyncpa [#allocation4], 1
    %125 = vsyncpa [#allocation5], 1

</llo_original>
